<compile_context>
chip_gen: v7x
topology: tpu7x:2x2x1
jax: 0.10.0
libtpu: 0.0.40
codegen_flags: <defaults>
</compile_context>

<pallas_src>
import jax
import jax.numpy as jnp
from jax.experimental import pallas as pl
from jax.experimental.pallas import tpu as pltpu

IN_DIM = 60
HID_DIM = 30
OUT_DIM = 1
DEFAULT_TM = 512  # batch-tile width (lanes); must be a multiple of 128


def mlp_kernel(xt_ref, w1_ref, b1_ref, w2_ref, b2_ref, o_ref):
    # xt_ref: (60, TM) bf16  -- batch on lanes (lane-dense)
    # w1_ref: (30, 60) bf16  -- PyTorch (out_features, in_features) layout
    # b1_ref: (30, 1)  f32
    # w2_ref: (30, 1)  f32   -- transposed PyTorch (1, 30) weight
    # b2_ref: (1, 1)   f32
    # o_ref : (1, TM)  f32   -- lane-dense output slab
    # Linear 1 on the MXU (bf16 inputs, f32 accumulation): (30,60)@(60,TM)
    h = jnp.dot(w1_ref[...], xt_ref[...], preferred_element_type=jnp.float32)
    # Bias + sigmoid in f32 (VPU + EUP), lane-dense (30, TM) tile.
    h = jax.nn.sigmoid(h + b1_ref[...])
    # Linear 2 (out_features=1): VPU multiply + sublane (XLU) reduction
    # instead of a wasteful 1-wide MXU matmul.
    y = jnp.sum(h * w2_ref[...], axis=0, keepdims=True) + b2_ref[...]  # (1, TM)
    o_ref[...] = y.astype(o_ref.dtype)


def network_forward(x, w1, b1, w2, b2, *, tm=DEFAULT_TM):
    """x: (B, 60) f32; weights/biases in PyTorch layout. Returns (B, 1) f32."""
    B = x.shape[0]
    assert tm % 128 == 0
    TM = B if B <= tm else tm          # block == full dim when B is small
    grid = (pl.cdiv(B, TM),)

    # Layout plumbing: batch onto lanes, bf16 for the DMA/MXU path.
    xt = x.astype(jnp.bfloat16).T                       # (60, B)
    w1b = w1.astype(jnp.bfloat16)                       # (30, 60)
    b1c = b1.reshape(HID_DIM, 1).astype(jnp.float32)    # (30, 1)
    w2c = w2.reshape(HID_DIM, 1).astype(jnp.float32)    # (30, 1)
    b2c = b2.reshape(1, 1).astype(jnp.float32)          # (1, 1)

    out_t = pl.pallas_call(
        mlp_kernel,
        out_shape=jax.ShapeDtypeStruct((OUT_DIM, B), jnp.float32),
        grid=grid,
        in_specs=[
            pl.BlockSpec((IN_DIM, TM), lambda i: (0, i)),       # x tile
            pl.BlockSpec((HID_DIM, IN_DIM), lambda i: (0, 0)),  # W1 (resident)
            pl.BlockSpec((HID_DIM, 1), lambda i: (0, 0)),       # b1
            pl.BlockSpec((HID_DIM, 1), lambda i: (0, 0)),       # W2^T
            pl.BlockSpec((1, 1), lambda i: (0, 0)),             # b2
        ],
        out_specs=pl.BlockSpec((OUT_DIM, TM), lambda i: (0, i)),
        compiler_params=pltpu.CompilerParams(
            dimension_semantics=("parallel",),   # shard batch tiles across TCs
        ),
    )(xt, w1b, b1c, w2c, b2c)
    return out_t.reshape(B, OUT_DIM)


def init_params(key):
    # PyTorch nn.Linear default init: U(-1/sqrt(fan_in), 1/sqrt(fan_in)),
    # weights stored in PyTorch (out_features, in_features) layout.
    k1, k2, k3, k4 = jax.random.split(key, 4)
    bound1 = 1.0 / jnp.sqrt(float(IN_DIM))
    bound2 = 1.0 / jnp.sqrt(float(HID_DIM))
    w1 = jax.random.uniform(k1, (HID_DIM, IN_DIM), jnp.float32, -bound1, bound1)
    b1 = jax.random.uniform(k2, (HID_DIM,), jnp.float32, -bound1, bound1)
    w2 = jax.random.uniform(k3, (OUT_DIM, HID_DIM), jnp.float32, -bound2, bound2)
    b2 = jax.random.uniform(k4, (OUT_DIM,), jnp.float32, -bound2, bound2)
    return w1, b1, w2, b2


def reference_forward(x, w1, b1, w2, b2):
    # Pure-JAX reference with true-f32 matmuls (PyTorch semantics).
    h = jax.nn.sigmoid(
        jnp.dot(x, w1.T, precision=jax.lax.Precision.HIGHEST) + b1)
    return jnp.dot(h, w2.T, precision=jax.lax.Precision.HIGHEST) + b2


def _check(B, key):
    k_param, k_x = jax.random.split(key)
    w1, b1, w2, b2 = init_params(k_param)
    x = jax.random.normal(k_x, (B, IN_DIM), jnp.float32)

    out = jax.block_until_ready(network_forward(x, w1, b1, w2, b2))
    assert out.shape == (B, OUT_DIM)

    # Reference with the same bf16-rounded x/W1 (kernel accumulates in f32):
    xq = x.astype(jnp.bfloat16).astype(jnp.float32)
    w1q = w1.astype(jnp.bfloat16).astype(jnp.float32)
    ref_q = reference_forward(xq, w1q, b1, w2, b2)
    assert jnp.allclose(out, ref_q, atol=5e-4, rtol=5e-4)

    # Full-precision reference (bounds the bf16 input-rounding error):
    ref = reference_forward(x, w1, b1, w2, b2)
    assert jnp.allclose(out, ref, atol=3e-2, rtol=3e-2)


if __name__ == "__main__":
    key = jax.random.PRNGKey(0)
    _check(B=8, key=key)        # small demo shape (single full-array tile)
    _check(B=1024, key=key)     # exercises the tiled (2-step) grid path
    print("KERNEL_OK")
</pallas_src>

<mosaic_0001>
module attributes {stable_mosaic.version = 11 : i64} {
  func.func @mlp_kernel(%arg0: i32, %arg1: memref<60x8xbf16, #tpu.memory_space<vmem>>, %arg2: memref<30x60xbf16, #tpu.memory_space<vmem>>, %arg3: memref<30x1xf32, #tpu.memory_space<vmem>>, %arg4: memref<30x1xf32, #tpu.memory_space<vmem>>, %arg5: memref<1x1xf32, #tpu.memory_space<vmem>>, %arg6: memref<1x8xf32, #tpu.memory_space<vmem>>) attributes {dimension_semantics = [#tpu.dimension_semantics<parallel>], iteration_bounds = array<i64: 1>, scalar_prefetch = 0 : i64, scratch_operands = 0 : i64, tpu.core_type = #tpu.core_type<tc>, window_params = [{transform_indices = @transform_0, window_bounds = array<i64: 60, 8>}, {pipeline_mode = #tpu.pipeline_mode<synchronous>, transform_indices = @transform_1, window_bounds = array<i64: 30, 60>}, {pipeline_mode = #tpu.pipeline_mode<synchronous>, transform_indices = @transform_2, window_bounds = array<i64: 30, 1>}, {pipeline_mode = #tpu.pipeline_mode<synchronous>, transform_indices = @transform_3, window_bounds = array<i64: 30, 1>}, {pipeline_mode = #tpu.pipeline_mode<synchronous>, transform_indices = @transform_4, window_bounds = array<i64: 1, 1>}, {transform_indices = @transform_5, window_bounds = array<i64: 1, 8>}]} {
    %c0 = arith.constant 0 : index
    %c0_0 = arith.constant 0 : index
    %0 = vector.load %arg2[%c0, %c0_0] : memref<30x60xbf16, #tpu.memory_space<vmem>>, vector<30x60xbf16>
    %c0_1 = arith.constant 0 : index
    %c0_2 = arith.constant 0 : index
    %1 = vector.load %arg1[%c0_1, %c0_2] : memref<60x8xbf16, #tpu.memory_space<vmem>>, vector<60x8xbf16>
    %cst = arith.constant dense<0.000000e+00> : vector<30x8xf32>
    %2 = tpu.matmul %0, %1, %cst {dimension_numbers = #tpu.dot_dimension_numbers<[1], [0], [0], [1], [0, 0, 1, 1], [], []>} : vector<30x60xbf16>, vector<60x8xbf16>, vector<30x8xf32> -> vector<30x8xf32>
    %c0_3 = arith.constant 0 : index
    %c0_4 = arith.constant 0 : index
    %3 = vector.load %arg3[%c0_3, %c0_4] : memref<30x1xf32, #tpu.memory_space<vmem>>, vector<30x1xf32>
    %4 = vector.broadcast %3 : vector<30x1xf32> to vector<30x8xf32>
    %5 = arith.addf %2, %4 : vector<30x8xf32>
    %6 = arith.negf %5 : vector<30x8xf32>
    %7 = math.exp %6 : vector<30x8xf32>
    %cst_5 = arith.constant 1.000000e+00 : f32
    %8 = vector.broadcast %cst_5 : f32 to vector<30x8xf32>
    %9 = arith.addf %8, %7 : vector<30x8xf32>
    %10 = arith.divf %8, %9 : vector<30x8xf32>
    %c0_6 = arith.constant 0 : index
    %c0_7 = arith.constant 0 : index
    %11 = vector.load %arg4[%c0_6, %c0_7] : memref<30x1xf32, #tpu.memory_space<vmem>>, vector<30x1xf32>
    %12 = vector.broadcast %11 : vector<30x1xf32> to vector<30x8xf32>
    %13 = arith.mulf %10, %12 : vector<30x8xf32>
    %cst_8 = arith.constant dense<0.000000e+00> : vector<8xf32>
    %14 = vector.multi_reduction <add>, %13, %cst_8 [0] : vector<30x8xf32> to vector<8xf32>
    %15 = vector.shape_cast %14 : vector<8xf32> to vector<1x8xf32>
    %c0_9 = arith.constant 0 : index
    %c0_10 = arith.constant 0 : index
    %16 = vector.load %arg5[%c0_9, %c0_10] : memref<1x1xf32, #tpu.memory_space<vmem>>, vector<1x1xf32>
    %17 = vector.broadcast %16 : vector<1x1xf32> to vector<1x8xf32>
    %18 = arith.addf %15, %17 : vector<1x8xf32>
    %c0_11 = arith.constant 0 : index
    %c0_12 = arith.constant 0 : index
    %19 = vector.load %arg6[%c0_11, %c0_12] : memref<1x8xf32, #tpu.memory_space<vmem>>, vector<1x8xf32>
    tpu.vector_store %arg6[%c0_11, %c0_12], %18 {strides = array<i32>} : memref<1x8xf32, #tpu.memory_space<vmem>>, vector<1x8xf32>,
    return
  }
  func.func @transform_0(%arg0: i32) -> (i32, i32) {
    %c0_i32 = arith.constant 0 : i32
    %c0_i32_0 = arith.constant 0 : i32
    return %c0_i32, %arg0 : i32, i32
  }
  func.func @transform_1(%arg0: i32) -> (i32, i32) {
    %c0_i32 = arith.constant 0 : i32
    %c0_i32_0 = arith.constant 0 : i32
    %c0_i32_1 = arith.constant 0 : i32
    return %c0_i32, %c0_i32_0 : i32, i32
  }
  func.func @transform_2(%arg0: i32) -> (i32, i32) {
    %c0_i32 = arith.constant 0 : i32
    %c0_i32_0 = arith.constant 0 : i32
    %c0_i32_1 = arith.constant 0 : i32
    return %c0_i32, %c0_i32_0 : i32, i32
  }
  func.func @transform_3(%arg0: i32) -> (i32, i32) {
    %c0_i32 = arith.constant 0 : i32
    %c0_i32_0 = arith.constant 0 : i32
    %c0_i32_1 = arith.constant 0 : i32
    return %c0_i32, %c0_i32_0 : i32, i32
  }
  func.func @transform_4(%arg0: i32) -> (i32, i32) {
    %c0_i32 = arith.constant 0 : i32
    %c0_i32_0 = arith.constant 0 : i32
    %c0_i32_1 = arith.constant 0 : i32
    return %c0_i32, %c0_i32_0 : i32, i32
  }
  func.func @transform_5(%arg0: i32) -> (i32, i32) {
    %c0_i32 = arith.constant 0 : i32
    %c0_i32_0 = arith.constant 0 : i32
    return %c0_i32, %arg0 : i32, i32
  }
}

</mosaic_0001>

<llo_original>
// kernel: tpu_custom_call.1
$region0: #{tpu_custom_call.1}
  #allocation0 [shape = 'u32[]', space=smem, size = 0x4, offset = 0x4, fixed_abs, tag = 'smem constant byte address 0x4 - core index']
  #allocation1 [shape = 'u32[144,128]{1,0:T(1,128)}', space=vmem, size = 0x12000, scoped, tag = 'internal scratch']
  #allocation2 [shape = 'f32[1,1]{1,0:T(1,128)S(1)}', space=vmem, size = 0x200, scoped, tag = 'scoped memory for tpu_custom_call.1']
  %s0 = inlined_call_operand.vmem [shape: bf16[60,8], index: 0, kind: input, shape index: {}]
  %s1 = inlined_call_operand.vmem [shape: bf16[30,60], index: 1, kind: input, shape index: {}]
  %s2 = inlined_call_operand.vmem [shape: f32[30,1], index: 2, kind: input, shape index: {}]
  %s3 = inlined_call_operand.vmem [shape: f32[30,1], index: 3, kind: input, shape index: {}]
  %s4 = inlined_call_operand.<no memory space> [shape: f32[1,1], index: 4, kind: input, shape index: {}]
  %s5 = inlined_call_operand.hbm [shape: f32[1,8], index: 5, kind: output, shape index: {}]
  %s6 = sld [smem:[#allocation0]]
  $region30: #{tpu_custom_call.1} parent=0
    _
  %s8 = ssub.s32 1, %s6
  %s9 = scalar_select 0, %s8, %s6
  %v10 = vstv %s4
  %11 = vst [vmem:[#allocation2] sm:$0x1] %v10
  $region1: #{tpu_custom_call.1} parent=0
    #allocation3 [shape = 'u8[512]{0}', space=vmem, size = 0x400, scoped, tag = 'output window, operand 0, single buffered']
    #allocation4 [shape = 's32[1]{0}', space=sflag, size = 0x4, scoped, tag = 'scoped memory for tpu_custom_call.1']
    %12 = vsyncpa [#allocation4], 0
    // Predicated region
    $region2: #{tpu_custom_call.1} parent=1 // pred_check
      _
    $region3: #{tpu_custom_call.1} parent=1 // pred_check_branch
      %14 = sbr.rel (0) target = $region5
    $region4: #{tpu_custom_call.1} parent=1 // pred_region
      _
    $region5: #{tpu_custom_call.1} parent=1 // pred_fallthru
      _
    // Predicated region
    $region6: #{tpu_custom_call.1} parent=1 // pred_check
      _
    $region7: #{tpu_custom_call.1} parent=1 // pred_check_branch
      %16 = sbr.rel (0) target = $region9
    $region8: #{tpu_custom_call.1} parent=1 // pred_region
      _
    $region9: #{tpu_custom_call.1} parent=1 // pred_fallthru
      _
    // Predicated region
    $region10: #{tpu_custom_call.1} parent=1 // pred_check
      _
    $region11: #{tpu_custom_call.1} parent=1 // pred_check_branch
      %18 = sbr.rel (0) target = $region13
    $region12: #{tpu_custom_call.1} parent=1 // pred_region
      _
    $region13: #{tpu_custom_call.1} parent=1 // pred_fallthru
      _
    // Predicated region
    $region14: #{tpu_custom_call.1} parent=1 // pred_check
      _
    $region15: #{tpu_custom_call.1} parent=1 // pred_check_branch
      %20 = sbr.rel (0) target = $region17
    $region16: #{tpu_custom_call.1} parent=1 // pred_region
      _
    $region17: #{tpu_custom_call.1} parent=1 // pred_fallthru
      _
    // Predicated region
    $region18: #{tpu_custom_call.1} parent=1 // pred_check
      _
    $region19: #{tpu_custom_call.1} parent=1 // pred_check_branch
      %22 = sbr.rel (0) target = $region21
    $region20: #{tpu_custom_call.1} parent=1 // pred_region
      _
    $region21: #{tpu_custom_call.1} parent=1 // pred_fallthru
      _
    %v24 = vld [vmem:[%s1] sm:$0xf]
    %v25 = vld [vmem:[%s1 + $0x4] sm:$0xf]
    %v26 = vld [vmem:[%s1 + $0x8] sm:$0xf]
    %v27 = vld [vmem:[%s1 + $0xc] sm:$0x7]
    %v28 = vld [vmem:[%s0] sm:$0xf]
    %v29 = vld [vmem:[%s0 + $0x4] sm:$0xf]
    %v30 = vld [vmem:[%s0 + $0x8] sm:$0xf]
    %v31 = vld [vmem:[%s0 + $0xc] sm:$0xf]
    %v32 = vld [vmem:[%s0 + $0x10] sm:$0xf]
    %v33 = vld [vmem:[%s0 + $0x14] sm:$0xf]
    %v34 = vld [vmem:[%s0 + $0x18] sm:$0xf]
    %v35 = vld [vmem:[%s0 + $0x1c] sm:$0x3]
    %v36 = vld [vmem:[%s2] sm:$0xff]
    %v37 = vld [vmem:[%s2 + $0x8] sm:$0xff]
    %v38 = vld [vmem:[%s2 + $0x10] sm:$0xff]
    %v39 = vld [vmem:[%s2 + $0x18] sm:$0x3f]
    %41 = vset.pattern.permute.xlu0 0
    %42 = vperm.xlu0 %41, %v36
    %v43 = vpop.permute.xlu0 %42
    %46 = vset.pattern.permute.xlu0 0
    %47 = vperm.xlu0 %46, %v37
    %v48 = vpop.permute.xlu0 %47
    %51 = vset.pattern.permute.xlu0 0
    %52 = vperm.xlu0 %51, %v38
    %v53 = vpop.permute.xlu0 %52
    %56 = vset.pattern.permute.xlu0 0
    %57 = vperm.xlu0 %56, %v39
    %v58 = vpop.permute.xlu0 %57
    %v64 = vunpack.c.l.b16 %v24
    %v65 = vunpack.c.l.b16 %v25
    %v66 = vunpack.c.l.b16 %v26
    %v67 = vunpack.c.l.b16 %v27
    %v68 = vpack.c.b16 %v65, %v64
    %v69 = vpack.c.b16 %v67, %v66
    %v78 = vunpack.c.l.b16 %v28
    %v79 = vunpack.c.l.b16 %v29
    %v80 = vunpack.c.l.b16 %v30
    %v81 = vunpack.c.l.b16 %v31
    %v82 = vunpack.c.l.b16 %v32
    %v83 = vunpack.c.l.b16 %v33
    %v84 = vunpack.c.l.b16 %v34
    %v85 = vunpack.c.l.b16 %v35
    %v86 = vpack.c.b16 %v79, %v78
    %v87 = vpack.c.b16 %v81, %v80
    %v88 = vpack.c.b16 %v83, %v82
    %v89 = vpack.c.b16 %v85, %v84
    %vm93 = vcmask 490496
    %v95 = vsel %vm93, %v68, 0
    %v98 = vsel %vm93, %v69, 0
    %vm100 = vcmask 1045504
    %v102 = vsel %vm100, %v89, 0
    %104 = vmatprep.subr.bf16.mxu0 0
    %105 = vmatpush1.bf16.msra.mxu0 %v86
    %106 = vmatprep.subr.bf16.mxu0 0
    %107 = vmatpush1.bf16.msra.mxu0 %v87
    %108 = vmatprep.subr.bf16.mxu0 0
    %109 = vmatpush1.bf16.msra.mxu0 %v88
    %110 = vmatprep.subr.bf16.mxu0 0
    %111 = vmatpush1.bf16.msra.mxu0 %v102
    %112 = vmatprep.subr.bf16.mxu0 0
    %113 = vmatpush1.bf16.msra.mxu0 0
    %114 = vmatprep.subr.bf16.mxu0 0
    %115 = vmatpush1.bf16.msra.mxu0 0
    %116 = vmatprep.subr.bf16.mxu0 0
    %117 = vmatpush1.bf16.msra.mxu0 0
    %118 = vmatprep.subr.bf16.mxu0 0
    %119 = vmatpush1.bf16.msra.mxu0 0
    %120 = vmatprep.subr.bf16.mxu0 0
    %121 = vmatpush1.bf16.msra.mxu0 0
    %122 = vmatprep.subr.bf16.mxu0 0
    %123 = vmatpush1.bf16.msra.mxu0 0
    %124 = vmatprep.subr.bf16.mxu0 0
    %125 = vmatpush1.bf16.msra.mxu0 0
    %126 = vmatprep.subr.bf16.mxu0 0
    %127 = vmatpush1.bf16.msra.mxu0 0
    %128 = vmatprep.subr.bf16.mxu0 0
    %129 = vmatpush1.bf16.msra.mxu0 0
    %130 = vmatprep.subr.bf16.mxu0 0
    %131 = vmatpush1.bf16.msra.mxu0 0
    %132 = vmatprep.subr.bf16.mxu0 0
    %133 = vmatpush1.bf16.msra.mxu0 0
    %134 = vmatprep.subr.bf16.mxu0 0
    %135 = vmatpush1.bf16.msra.mxu0 0
    %136 = vmatprep.mubr.bf16.mxu0 0
    %137 = vmatmul.mubr.bf16.gmra.mrb[0].mxu0 %v95
    %v138 = vpop.f32.mrb[0].mxu0
    %v139 = vadd.f32 %v43, %v138
    %v140 = vpop.f32.mrb[0].mxu0
    %v141 = vpop.f32.mrb[0].mxu0
    %v142 = vadd.f32 %v48, %v141
    %v143 = vpop.f32.mrb[0].mxu0
    %144 = vmatprep.mubr.bf16.mxu0 0
    %145 = vmatmul.mubr.bf16.gmra.mrb[0].mxu0 %v98
    %v146 = vpop.f32.mrb[0].mxu0
    %v147 = vadd.f32 %v53, %v146
    %v148 = vpop.f32.mrb[0].mxu0
    %v149 = vpop.f32.mrb[0].mxu0
    %v150 = vadd.f32 %v58, %v149
    %v151 = vpop.f32.mrb[0].mxu0
    %152 = vdwg.mxu0
    %v153 = vxor.u32 %v139, 2147483648
    %v154 = vxor.u32 %v142, 2147483648
    %v155 = vxor.u32 %v147, 2147483648
    %v156 = vxor.u32 %v150, 2147483648
    %v157 = vmul.f32 %v153, 1.442695
    %v158 = vpow.pop %v157
    %v159 = vmul.f32 %v154, 1.442695
    %v160 = vpow.pop %v159
    %v161 = vmul.f32 %v155, 1.442695
    %v162 = vpow.pop %v161
    %v163 = vmul.f32 %v156, 1.442695
    %v164 = vpow.pop %v163
    %v165 = vadd.f32 %v158, 1.0
    %v166 = vadd.f32 %v160, 1.0
    %v167 = vadd.f32 %v162, 1.0
    %v168 = vadd.f32 %v164, 1.0
    %v169 = vrcp.pop %v165
    %v170 = vmul.f32 1.0, %v169
    %v171 = vrcp.pop %v166
    %v172 = vmul.f32 1.0, %v171
    %v173 = vrcp.pop %v167
    %v174 = vmul.f32 1.0, %v173
    %v175 = vrcp.pop %v168
    %v176 = vmul.f32 1.0, %v175
    %v177 = vld [vmem:[%s3] sm:$0xff]
    %v178 = vld [vmem:[%s3 + $0x8] sm:$0xff]
    %v179 = vld [vmem:[%s3 + $0x10] sm:$0xff]
    %v180 = vld [vmem:[%s3 + $0x18] sm:$0x3f]
    %182 = vset.pattern.permute.xlu0 0
    %183 = vperm.xlu0 %182, %v177
    %v184 = vpop.permute.xlu0 %183
    %187 = vset.pattern.permute.xlu0 0
    %188 = vperm.xlu0 %187, %v178
    %v189 = vpop.permute.xlu0 %188
    %192 = vset.pattern.permute.xlu0 0
    %193 = vperm.xlu0 %192, %v179
    %v194 = vpop.permute.xlu0 %193
    %197 = vset.pattern.permute.xlu0 0
    %198 = vperm.xlu0 %197, %v180
    %v199 = vpop.permute.xlu0 %198
    %v201 = vmul.f32 %v170, %v184
    %v202 = vmul.f32 %v172, %v189
    %v203 = vmul.f32 %v174, %v194
    %v204 = vmul.f32 %v176, %v199
    %vm205 = vcmask 64512
    %v206 = vsel %vm205, %v201, 0.0
    %v207 = vsel %vm205, %v202, 0.0
    %v208 = vadd.f32 %v206, %v207
    %v209 = vsel %vm205, %v203, 0.0
    %v210 = vadd.f32 %v208, %v209
    %vm211 = vcmask 62464
    %v212 = vsel %vm211, %v204, 0.0
    %v213 = vadd.f32 %v210, %v212
    %v214 = vrot.slane %v213, 4
    %v215 = vadd.f32 %v213, %v214
    %v216 = vrot.slane %v215, 2
    %v217 = vadd.f32 %v215, %v216
    %v218 = vrot.slane %v217, 1
    %v219 = vadd.f32 %v217, %v218
    %v220 = vld [vmem:[#allocation2] sm:$0x1]
    %222 = vset.pattern.permute.xlu0 0
    %223 = vperm.xlu0 %222, %v220
    %v224 = vpop.permute.xlu0 %223
    %v226 = vlaneseq
    %v227 = vshrl.u32 %v226, 7
    %v228 = vsub.s32 0, %v227
    %v229 = vrot.slane %v224, %v228
    %v230 = vadd.f32 %v219, %v229
    %vm231 = vcmask 57344
    %232 = vst.msk [vmem:[#allocation3] sm:$0x1] %vm231, %v230
    // Predicated region
    $region22: #{tpu_custom_call.1} parent=1 // pred_check
      _
    $region23: #{tpu_custom_call.1} parent=1 // pred_check_branch
      %234 = sbr.rel (0) target = $region25
    $region24: #{tpu_custom_call.1} parent=1 // pred_region
      %s236 = ssub.s32 16, 16
      %237 = vsyncadd [#allocation4], %s236
      %s239 = sshll.u32 [#allocation3], 4
      %s240 = int_to_ptr.vmem [resolvable:$true] %s239
      %242 = dma.vmem_to_hbm [thread:$0]  %s240, 16, %s5, [#allocation4]
    $region25: #{tpu_custom_call.1} parent=1 // pred_fallthru
      _
    // Predicated region
    $region26: #{tpu_custom_call.1} parent=1 // pred_check
      _
    $region27: #{tpu_custom_call.1} parent=1 // pred_check_branch
      %244 = sbr.rel (0) target = $region29
    $region28: #{tpu_custom_call.1} parent=1 // pred_region
      %245 = dma.done [#allocation4], 16
    $region29: #{tpu_custom_call.1} parent=1 // pred_fallthru
      _
    %246 = vsyncpa [#allocation4], 1

</llo_original>
